<compile_context>
chip_gen: v6e
topology: v6e:2x2x1
jax: 0.10.0
libtpu: 0.0.40
codegen_flags: <defaults>
</compile_context>

<pallas_src>
import jax
import jax.numpy as jnp
from jax.experimental import pallas as pl
from jax.experimental.pallas import tpu as pltpu


def _mlp_kernel(x_ref, w1_ref, b1_ref, w2_ref, b2_ref, o_ref):
    # hidden = relu(x @ W1 + b1)   -- single MXU matmul, f32 accumulation
    h = jnp.dot(x_ref[...], w1_ref[...], preferred_element_type=jnp.float32)
    h = jnp.maximum(h + b1_ref[...], 0.0)          # (N, D2) + (1, D2) broadcast
    # (Dropout: identity in eval mode)

    # risk = relu(h @ W2 + b2), done as VPU mul + XLU lane-reduce:
    # W2 is passed pre-transposed as (1, D2) so the mul broadcasts on lanes and
    # the reduce collapses the lane axis — no second MXU round-trip.
    y = jnp.sum(h * w2_ref[...], axis=-1, keepdims=True)   # (N, 1)
    y = y + b2_ref[0, 0]                                    # scalar bias from SMEM
    o_ref[...] = jnp.maximum(y, 0.0).astype(o_ref.dtype)
    # (Dropout: identity in eval mode)


@jax.jit
def nn_forward(x, w1, b1, w2, b2):
    """x: (N, D1); w1: (D1, D2); b1: (1, D2); w2: (D2, 1); b2: (1, 1)."""
    N, _ = x.shape
    w2_row = w2.T  # (1, D2): lane-major layout for the in-kernel mul+reduce

    return pl.pallas_call(
        _mlp_kernel,
        out_shape=jax.ShapeDtypeStruct((N, 1), jnp.float32),
        in_specs=[
            pl.BlockSpec(memory_space=pltpu.MemorySpace.VMEM),  # x
            pl.BlockSpec(memory_space=pltpu.MemorySpace.VMEM),  # W1
            pl.BlockSpec(memory_space=pltpu.MemorySpace.VMEM),  # b1
            pl.BlockSpec(memory_space=pltpu.MemorySpace.VMEM),  # W2 (as (1, D2))
            pl.BlockSpec(memory_space=pltpu.MemorySpace.SMEM),  # b2 scalar
        ],
        out_specs=pl.BlockSpec(memory_space=pltpu.MemorySpace.VMEM),
    )(x, w1, b1, w2_row, b2)


def init_params(key, dimension, dimension2):
    """Deterministic init mimicking torch.nn.Linear (uniform +/- 1/sqrt(fan_in))."""
    k1, k2, k3, k4 = jax.random.split(key, 4)
    bound1 = 1.0 / jnp.sqrt(dimension)
    bound2 = 1.0 / jnp.sqrt(dimension2)
    w1 = jax.random.uniform(k1, (dimension, dimension2), jnp.float32,
                            minval=-bound1, maxval=bound1)
    b1 = jax.random.uniform(k2, (1, dimension2), jnp.float32,
                            minval=-bound1, maxval=bound1)
    w2 = jax.random.uniform(k3, (dimension2, 1), jnp.float32,
                            minval=-bound2, maxval=bound2)
    b2 = jax.random.uniform(k4, (1, 1), jnp.float32,
                            minval=-bound2, maxval=bound2)
    return w1, b1, w2, b2


if __name__ == "__main__":
    # Small shapes consistent with the module: batch=8, dimension=32, dimension2=64
    N, dimension, dimension2 = 8, 32, 64
    p = 0.5  # dropout prob (unused at inference)

    key = jax.random.PRNGKey(0)
    kx, kp = jax.random.split(key)
    x = jax.random.normal(kx, (N, dimension), jnp.float32)
    w1, b1, w2, b2 = init_params(kp, dimension, dimension2)

    risk_score = nn_forward(x, w1, b1, w2, b2)
    jax.block_until_ready(risk_score)

    # Pure-JAX reference check
    ref = jnp.maximum(jnp.maximum(x @ w1 + b1, 0.0) @ w2 + b2, 0.0)
    assert risk_score.shape == (N, 1)
    assert jnp.allclose(risk_score, ref, atol=1e-5, rtol=1e-5)

    print("KERNEL_OK")
</pallas_src>

<mosaic_0001>
module attributes {stable_mosaic.version = 11 : i64} {
  func.func @_mlp_kernel(%arg0: memref<8x32xf32, #tpu.memory_space<vmem>>, %arg1: memref<32x64xf32, #tpu.memory_space<vmem>>, %arg2: memref<1x64xf32, #tpu.memory_space<vmem>>, %arg3: memref<1x64xf32, #tpu.memory_space<vmem>>, %arg4: memref<1x1xf32, #tpu.memory_space<smem>>, %arg5: memref<8x1xf32, #tpu.memory_space<vmem>>) attributes {dimension_semantics = [], scalar_prefetch = 0 : i64, scratch_operands = 0 : i64, tpu.core_type = #tpu.core_type<tc>} {
    %c0 = arith.constant 0 : index
    %c0_0 = arith.constant 0 : index
    %0 = vector.load %arg0[%c0, %c0_0] : memref<8x32xf32, #tpu.memory_space<vmem>>, vector<8x32xf32>
    %c0_1 = arith.constant 0 : index
    %c0_2 = arith.constant 0 : index
    %1 = vector.load %arg1[%c0_1, %c0_2] : memref<32x64xf32, #tpu.memory_space<vmem>>, vector<32x64xf32>
    %cst = arith.constant dense<0.000000e+00> : vector<8x64xf32>
    %2 = tpu.matmul %0, %1, %cst {dimension_numbers = #tpu.dot_dimension_numbers<[1], [0], [0], [1], [0, 0, 1, 1], [], []>} : vector<8x32xf32>, vector<32x64xf32>, vector<8x64xf32> -> vector<8x64xf32>
    %c0_3 = arith.constant 0 : index
    %c0_4 = arith.constant 0 : index
    %3 = vector.load %arg2[%c0_3, %c0_4] : memref<1x64xf32, #tpu.memory_space<vmem>>, vector<1x64xf32>
    %4 = vector.broadcast %3 : vector<1x64xf32> to vector<8x64xf32>
    %5 = arith.addf %2, %4 : vector<8x64xf32>
    %cst_5 = arith.constant 0.000000e+00 : f32
    %6 = vector.broadcast %cst_5 : f32 to vector<8x64xf32>
    %7 = arith.maximumf %5, %6 : vector<8x64xf32>
    %c0_6 = arith.constant 0 : index
    %c0_7 = arith.constant 0 : index
    %8 = vector.load %arg3[%c0_6, %c0_7] : memref<1x64xf32, #tpu.memory_space<vmem>>, vector<1x64xf32>
    %9 = vector.broadcast %8 : vector<1x64xf32> to vector<8x64xf32>
    %10 = arith.mulf %7, %9 : vector<8x64xf32>
    %cst_8 = arith.constant dense<0.000000e+00> : vector<8xf32>
    %11 = vector.multi_reduction <add>, %10, %cst_8 [1] : vector<8x64xf32> to vector<8xf32>
    %12 = vector.shape_cast %11 : vector<8xf32> to vector<8x1xf32>
    %c0_9 = arith.constant 0 : index
    %c0_10 = arith.constant 0 : index
    %13 = memref.load %arg4[%c0_9, %c0_10] : memref<1x1xf32, #tpu.memory_space<smem>>
    %14 = vector.broadcast %13 : f32 to vector<8x1xf32>
    %15 = arith.addf %12, %14 : vector<8x1xf32>
    %cst_11 = arith.constant 0.000000e+00 : f32
    %16 = vector.broadcast %cst_11 : f32 to vector<8x1xf32>
    %17 = arith.maximumf %15, %16 : vector<8x1xf32>
    %c0_12 = arith.constant 0 : index
    %c0_13 = arith.constant 0 : index
    %18 = vector.load %arg5[%c0_12, %c0_13] : memref<8x1xf32, #tpu.memory_space<vmem>>, vector<8x1xf32>
    tpu.vector_store %arg5[%c0_12, %c0_13], %17 {strides = array<i32>} : memref<8x1xf32, #tpu.memory_space<vmem>>, vector<8x1xf32>,
    return
  }
}

</mosaic_0001>

<llo_original>
// kernel: nn_forward.1
$region0: #{nn_forward.1}
  #allocation0 [shape = 'u32[]', space=smem, size = 0x4, offset = 0x4, fixed_abs, tag = 'smem constant byte address 0x4 - core index']
  #allocation1 [shape = 'u32[144,128]{1,0:T(1,128)}', space=vmem, size = 0x12000, scoped, tag = 'internal scratch']
  #allocation2 [shape = 'f32[1,1]{1,0:T(1,128)S(6)}', space=smem, size = 0x200, scoped, tag = 'scoped memory for nn_forward.1']
  %s0 = inlined_call_operand.hbm [shape: f32[8,32], index: 0, kind: input, shape index: {}]
  %s1 = inlined_call_operand.hbm [shape: f32[32,64], index: 1, kind: input, shape index: {}]
  %s2 = inlined_call_operand.vmem [shape: f32[1,64], index: 2, kind: input, shape index: {}]
  %s3 = inlined_call_operand.vmem [shape: f32[1,64], index: 3, kind: input, shape index: {}]
  %s4 = inlined_call_operand.<no memory space> [shape: f32[1,1], index: 4, kind: input, shape index: {}]
  %s5 = inlined_call_operand.vmem [shape: f32[8,1], index: 5, kind: output, shape index: {}]
  %s6 = sld [smem:[#allocation0]]
  $region38: #{nn_forward.1} parent=0
    _
  %s8 = ssub.s32 1, %s6
  %s9 = scalar_select 0, %s8, %s6
  %10 = sst [smem:[#allocation2]] %s4
  $region1: #{nn_forward.1} parent=0
    #allocation3 [shape = 'u8[4096]{0}', space=vmem, size = 0x1000, scoped, tag = 'input window, operand 0, single buffered']
    #allocation4 [shape = 's32[1]{0}', space=sflag, size = 0x4, scoped, tag = 'scoped memory for nn_forward.1']
    #allocation5 [shape = 'u8[16384]{0}', space=vmem, size = 0x4000, scoped, tag = 'input window, operand 1, single buffered']
    #allocation6 [shape = 's32[1]{0}', space=sflag, size = 0x4, scoped, tag = 'scoped memory for nn_forward.1']
    %11 = vsyncpa [#allocation4], 0
    %12 = vsyncpa [#allocation6], 0
    // Predicated region
    $region2: #{nn_forward.1} parent=1 // pred_check
      _
    $region3: #{nn_forward.1} parent=1 // pred_check_branch
      %14 = sbr.rel (0) target = $region5
    $region4: #{nn_forward.1} parent=1 // pred_region
      %s16 = ssub.s32 128, 128
      %17 = vsyncadd [#allocation4], %s16
      %s19 = sshll.u32 [#allocation3], 4
      %s20 = int_to_ptr.vmem [resolvable:$true] %s19
      %22 = dma.hbm_to_vmem [thread:$0]  %s0, 128, %s20, [#allocation4]
    $region5: #{nn_forward.1} parent=1 // pred_fallthru
      _
    // Predicated region
    $region6: #{nn_forward.1} parent=1 // pred_check
      _
    $region7: #{nn_forward.1} parent=1 // pred_check_branch
      %24 = sbr.rel (0) target = $region9
    $region8: #{nn_forward.1} parent=1 // pred_region
      %s26 = ssub.s32 512, 512
      %27 = vsyncadd [#allocation6], %s26
      %s28 = sshll.u32 [#allocation5], 4
      %s29 = int_to_ptr.vmem [resolvable:$true] %s28
      %34 = dma.hbm_to_vmem [thread:$0]  %s1, 512, %s29, [#allocation6], 128, 128, 8
    $region9: #{nn_forward.1} parent=1 // pred_fallthru
      _
    // Predicated region
    $region10: #{nn_forward.1} parent=1 // pred_check
      _
    $region11: #{nn_forward.1} parent=1 // pred_check_branch
      %36 = sbr.rel (0) target = $region13
    $region12: #{nn_forward.1} parent=1 // pred_region
      _
    $region13: #{nn_forward.1} parent=1 // pred_fallthru
      _
    // Predicated region
    $region14: #{nn_forward.1} parent=1 // pred_check
      _
    $region15: #{nn_forward.1} parent=1 // pred_check_branch
      %38 = sbr.rel (0) target = $region17
    $region16: #{nn_forward.1} parent=1 // pred_region
      _
    $region17: #{nn_forward.1} parent=1 // pred_fallthru
      _
    // Predicated region
    $region18: #{nn_forward.1} parent=1 // pred_check
      _
    $region19: #{nn_forward.1} parent=1 // pred_check_branch
      %40 = sbr.rel (0) target = $region21
    $region20: #{nn_forward.1} parent=1 // pred_region
      _
    $region21: #{nn_forward.1} parent=1 // pred_fallthru
      _
    // Predicated region
    $region22: #{nn_forward.1} parent=1 // pred_check
      _
    $region23: #{nn_forward.1} parent=1 // pred_check_branch
      %42 = sbr.rel (0) target = $region25
    $region24: #{nn_forward.1} parent=1 // pred_region
      %43 = dma.done [#allocation4], 128
    $region25: #{nn_forward.1} parent=1 // pred_fallthru
      _
    // Predicated region
    $region26: #{nn_forward.1} parent=1 // pred_check
      _
    $region27: #{nn_forward.1} parent=1 // pred_check_branch
      %45 = sbr.rel (0) target = $region29
    $region28: #{nn_forward.1} parent=1 // pred_region
      %46 = dma.done [#allocation6], 512
    $region29: #{nn_forward.1} parent=1 // pred_fallthru
      _
    %v47 = vld [vmem:[#allocation3] sm:$0xff]
    %v48 = vld [vmem:[#allocation5] sm:$0xff]
    %v49 = vld [vmem:[#allocation5 + $0x8] sm:$0xff]
    %v50 = vld [vmem:[#allocation5 + $0x10] sm:$0xff]
    %v51 = vld [vmem:[#allocation5 + $0x18] sm:$0xff]
    %v52 = vld [vmem:[%s2] sm:$0x1]
    %v54 = vlaneseq
    %v55 = vshrl.u32 %v54, 7
    %v56 = vsub.s32 0, %v55
    %v57 = vrot.slane %v52, %v56
    %vm59 = vcmask 261120
    %v61 = vsel %vm59, %v47, 0
    %63 = vmatprep.subr.mxu0 0.0
    %64 = vmatpush1.msra.mxu0 0.0
    %65 = vmatprep.subr.mxu0 0.0
    %66 = vmatpush1.msra.mxu0 0.0
    %67 = vmatprep.subr.mxu0 0.0
    %68 = vmatpush1.msra.mxu0 0.0
    %69 = vmatprep.subr.mxu0 0.0
    %70 = vmatpush1.msra.mxu0 0.0
    %71 = vmatprep.subr.mxu0 0.0
    %72 = vmatpush1.msra.mxu0 0.0
    %73 = vmatprep.subr.mxu0 0.0
    %74 = vmatpush1.msra.mxu0 0.0
    %75 = vmatprep.subr.mxu0 0.0
    %76 = vmatpush1.msra.mxu0 0.0
    %77 = vmatprep.subr.mxu0 0.0
    %78 = vmatpush1.msra.mxu0 0.0
    %79 = vmatprep.subr.mxu0 0.0
    %80 = vmatpush1.msra.mxu0 0.0
    %81 = vmatprep.subr.mxu0 0.0
    %82 = vmatpush1.msra.mxu0 0.0
    %83 = vmatprep.subr.mxu0 0.0
    %84 = vmatpush1.msra.mxu0 0.0
    %85 = vmatprep.subr.mxu0 0.0
    %86 = vmatpush1.msra.mxu0 0.0
    %87 = vmatprep.subr.mxu0 0.0
    %88 = vmatpush1.msra.mxu0 %v51
    %89 = vmatprep.subr.mxu0 0.0
    %90 = vmatpush1.msra.mxu0 %v50
    %91 = vmatprep.subr.mxu0 0.0
    %92 = vmatpush1.msra.mxu0 %v49
    %93 = vmatprep.subr.mxu0 0.0
    %94 = vmatpush1.msra.mxu0 %v48
    %95 = vmatprep.subr.mxu0 0.0
    %96 = vmatpush2.msra.mxu0 0.0
    %97 = vmatprep.subr.mxu0 0.0
    %98 = vmatpush2.msra.mxu0 0.0
    %99 = vmatprep.subr.mxu0 0.0
    %100 = vmatpush2.msra.mxu0 0.0
    %101 = vmatprep.subr.mxu0 0.0
    %102 = vmatpush2.msra.mxu0 0.0
    %103 = vmatprep.subr.mxu0 0.0
    %104 = vmatpush2.msra.mxu0 0.0
    %105 = vmatprep.subr.mxu0 0.0
    %106 = vmatpush2.msra.mxu0 0.0
    %107 = vmatprep.subr.mxu0 0.0
    %108 = vmatpush2.msra.mxu0 0.0
    %109 = vmatprep.subr.mxu0 0.0
    %110 = vmatpush2.msra.mxu0 0.0
    %111 = vmatprep.subr.mxu0 0.0
    %112 = vmatpush2.msra.mxu0 0.0
    %113 = vmatprep.subr.mxu0 0.0
    %114 = vmatpush2.msra.mxu0 0.0
    %115 = vmatprep.subr.mxu0 0.0
    %116 = vmatpush2.msra.mxu0 0.0
    %117 = vmatprep.subr.mxu0 0.0
    %118 = vmatpush2.msra.mxu0 0.0
    %119 = vmatprep.subr.mxu0 0.0
    %120 = vmatpush2.msra.mxu0 0.0
    %121 = vmatprep.subr.mxu0 0.0
    %122 = vmatpush2.msra.mxu0 0.0
    %123 = vmatprep.subr.mxu0 0.0
    %124 = vmatpush2.msra.mxu0 0.0
    %125 = vmatprep.subr.mxu0 0.0
    %126 = vmatpush2.msra.mxu0 0.0
    %127 = vmatprep.mubr.f32.mxu0 0.0
    %128 = vmatmul.mubr.f32.gmra.mxu0 %v61
    %v129 = vpop.f32.mrf.mxu0
    %v130 = vadd.f32 %v57, %v129
    %v131 = vpop.f32.mrf.mxu0
    %132 = vdwg.mxu0
    %v133 = vmax.f32 %v130, 0.0
    %v134 = vld [vmem:[%s3] sm:$0x1]
    %v136 = vlaneseq
    %v137 = vshrl.u32 %v136, 7
    %v138 = vsub.s32 0, %v137
    %v139 = vrot.slane %v134, %v138
    %v141 = vmul.f32 %v133, %v139
    %vm142 = vcmask 523264
    %v143 = vsel %vm142, %v141, 0.0
    %144 = vadd.xlane.f32.xlu0 %v143
    %v145 = vpop.xlane.xlu0 %144
    %s146 = sld [smem:[#allocation2]]
    %v147 = vstv %s146
    %v148 = vadd.f32 %v145, %v147
    %v149 = vmax.f32 %v148, 0.0
    %vm150 = vcmask 7168
    %151 = vst.msk [vmem:[%s5] sm:$0xff] %vm150, %v149
    // Predicated region
    $region30: #{nn_forward.1} parent=1 // pred_check
      _
    $region31: #{nn_forward.1} parent=1 // pred_check_branch
      %153 = sbr.rel (0) target = $region33
    $region32: #{nn_forward.1} parent=1 // pred_region
      _
    $region33: #{nn_forward.1} parent=1 // pred_fallthru
      _
    // Predicated region
    $region34: #{nn_forward.1} parent=1 // pred_check
      _
    $region35: #{nn_forward.1} parent=1 // pred_check_branch
      %155 = sbr.rel (0) target = $region37
    $region36: #{nn_forward.1} parent=1 // pred_region
      _
    $region37: #{nn_forward.1} parent=1 // pred_fallthru
      _
    %156 = vsyncpa [#allocation4], 1
    %157 = vsyncpa [#allocation6], 1

</llo_original>
